<compile_context>
chip_gen: v5e
topology: v5e:2x2
jax: 0.10.0
libtpu: 0.0.40
codegen_flags: <defaults>
</compile_context>

<pallas_src>
import functools

import jax
import jax.numpy as jnp
from jax.experimental import pallas as pl
from jax.experimental.pallas import tpu as pltpu


# --- tile-size selection ----------------------------------------------------
_TARGET_BLOCK_BYTES = 4 * 1024 * 1024   # per input, per block (~2-4 MiB sweet spot)
_PIPELINE_BUFFERS = 2                   # BlockSpec default double-buffering
_MIN_GRID_STEPS = 4                     # keep the pipeline busy / feed both v7x TCs


def _ceil_div(a, b):
    return -(-a // b)


def _round_down8(x):
    return max(8, (x // 8) * 8)


def _round_up8(x):
    return ((x + 7) // 8) * 8


def _vmem_budgets():
    """(input_dma_budget_bytes, vmem_limit_bytes), gated on chip generation."""
    try:
        cap = int(getattr(pltpu.get_tpu_info(), "vmem_capacity_bytes", 0))
    except Exception:
        cap = 0
    if cap >= 100 * 1024 * 1024:
        # 128 MiB parts (v5e / v6e): a bigger budget helps very wide D.
        return 64 * 1024 * 1024, 96 * 1024 * 1024
    # Unknown or v7x (64 MiB physical VMEM): stay conservative.
    return 32 * 1024 * 1024, 48 * 1024 * 1024


def _choose_tiles(B, D, itemsize):
    """Pick (batch_tile, feature_tile, vmem_limit) for a (B, D) streaming reduce."""
    input_budget, vmem_limit = _vmem_budgets()
    # Per-input, per-pipeline-buffer cap so 2 inputs x N buffers fit the budget.
    per_block_cap = input_budget // (2 * _PIPELINE_BUFFERS)
    target = min(_TARGET_BLOCK_BYTES, per_block_cap)

    # ---- feature (lane) tile: keep full D unless even an 8-row slab blows the
    # cap; in that case split D into lane-dense multiples of 128 and accumulate
    # over a second grid axis.
    if 8 * D * itemsize <= per_block_cap:
        td = D
    else:
        td = max(128, (per_block_cap // (8 * itemsize * 128)) * 128)
        td = min(td, D)

    # ---- batch (sublane) tile: as many rows as the byte target allows.
    rows_by_bytes = max(8, target // (td * itemsize))
    if B <= 8:
        tb = B                               # full dim; any size is legal
    else:
        tb = min(rows_by_bytes, B)
        if tb != B:
            tb = _round_down8(tb)
        if td == D:
            # Ensure a few grid steps so the input DMA can be overlapped and
            # v7x's two TensorCores both get blocks on the "parallel" axis.
            want = min(_MIN_GRID_STEPS, _ceil_div(B, 8))
            if _ceil_div(B, tb) < want:
                tb = _round_down8(_ceil_div(B, want))
            # Prefer an even block count so the parallel axis splits evenly
            # across v7x's two TensorCores (no effect on v5e/v6e).
            nb = _ceil_div(B, tb)
            if nb > 1 and nb % 2 == 1:
                cand = _round_up8(_ceil_div(B, nb + 1))
                if 8 <= cand < B and _ceil_div(B, cand) == nb + 1:
                    tb = cand
    return tb, td, vmem_limit


# --- kernel -----------------------------------------------------------------
def _cc_partial_kernel(p_ref, t_ref, o_ref, *,
                       total_rows, block_rows, total_cols, block_cols):
    """One (TB, TD) tile of each input; accumulates sum((p-t)^2) into o_ref."""
    k = pl.program_id(1)

    @pl.when(k == 0)
    def _init():
        o_ref[...] = jnp.zeros_like(o_ref)

    p = p_ref[...].astype(jnp.float32)
    t = t_ref[...].astype(jnp.float32)
    d = p - t
    sq = d * d

    # Column mask only when D itself is split into ragged tiles (huge-D path).
    if total_cols % block_cols != 0:
        col_ids = k * block_cols + jax.lax.broadcasted_iota(jnp.int32, sq.shape, 1)
        sq = jnp.where(col_ids < total_cols, sq, 0.0)

    # Reduce the feature axis first, then mask ragged batch rows on the cheap
    # (TB, 1) partial (avoids a full-tile int32 iota + per-element select).
    row_sums = jnp.sum(sq, axis=1, keepdims=True)
    if total_rows % block_rows != 0:
        row_ids = (pl.program_id(0) * block_rows
                   + jax.lax.broadcasted_iota(jnp.int32, row_sums.shape, 0))
        row_sums = jnp.where(row_ids < total_rows, row_sums, 0.0)

    o_ref[...] += jnp.sum(row_sums).reshape(1, 1, 1)


# --- wrapper ----------------------------------------------------------------
@jax.jit
def cross_correlation_loss(predictions, targets):
    """Pallas TPU cross-correlation loss. predictions/targets: (B, D)."""
    assert predictions.shape == targets.shape
    B, D = predictions.shape
    itemsize = jnp.dtype(predictions.dtype).itemsize

    tb, td, vmem_limit = _choose_tiles(B, D, itemsize)
    num_b_blocks = _ceil_div(B, tb)
    num_d_blocks = _ceil_div(D, td)

    kernel = functools.partial(
        _cc_partial_kernel,
        total_rows=B, block_rows=tb, total_cols=D, block_cols=td)

    partials = pl.pallas_call(
        kernel,
        out_shape=jax.ShapeDtypeStruct((num_b_blocks, 1, 1), jnp.float32),
        grid_spec=pltpu.PrefetchScalarGridSpec(
            num_scalar_prefetch=0,
            grid=(num_b_blocks, num_d_blocks),
            in_specs=[
                pl.BlockSpec((tb, td), lambda i, k: (i, k)),
                pl.BlockSpec((tb, td), lambda i, k: (i, k)),
            ],
            # Output block constant across the D (reduction) axis -> resident
            # accumulator; zero at k==0 inside the kernel.
            out_specs=pl.BlockSpec((1, 1, 1), lambda i, k: (i, 0, 0)),
        ),
        compiler_params=pltpu.CompilerParams(
            dimension_semantics=("parallel", "arbitrary"),
            vmem_limit_bytes=vmem_limit,
        ),
        cost_estimate=pl.CostEstimate(
            flops=3 * B * D,                       # sub + mul + add per element
            transcendentals=0,
            bytes_accessed=2 * B * D * itemsize + 4 * num_b_blocks,
        ),
    )(predictions, targets)

    # Tiny final reduction + mean over the TRUE batch size, done in plain JAX.
    return jnp.sum(partials) / jnp.float32(B)


# --- reference + demo --------------------------------------------------------
def _reference(predictions, targets):
    p = predictions.astype(jnp.float32)
    t = targets.astype(jnp.float32)
    row = (jnp.sum(jnp.square(p), axis=1)
           + jnp.sum(jnp.square(t), axis=1)
           - 2.0 * jnp.sum(p * t, axis=1))
    return jnp.mean(row)


if __name__ == "__main__":
    key = jax.random.PRNGKey(0)
    kp, kt = jax.random.split(key)

    # Small demo shape consistent with the module (batch, feature_dim).
    B, D = 16, 128
    predictions = jax.random.normal(kp, (B, D), dtype=jnp.float32)
    targets = jax.random.normal(kt, (B, D), dtype=jnp.float32)

    loss = cross_correlation_loss(predictions, targets)
    jax.block_until_ready(loss)
    ref = _reference(predictions, targets)
    assert jnp.allclose(loss, ref, rtol=1e-5, atol=1e-4), (loss, ref)

    # Ragged-batch case (multi-block grid + last-tile row masking).
    B2 = 20
    kp2, kt2 = jax.random.split(kt)
    p2 = jax.random.normal(kp2, (B2, D), dtype=jnp.float32)
    t2 = jax.random.normal(kt2, (B2, D), dtype=jnp.float32)
    loss2 = cross_correlation_loss(p2, t2)
    jax.block_until_ready(loss2)
    ref2 = _reference(p2, t2)
    assert jnp.allclose(loss2, ref2, rtol=1e-5, atol=1e-4), (loss2, ref2)

    # bf16 inputs exercise the dtype-aware block sizing + f32 accumulation.
    p3 = predictions.astype(jnp.bfloat16)
    t3 = targets.astype(jnp.bfloat16)
    loss3 = cross_correlation_loss(p3, t3)
    jax.block_until_ready(loss3)
    ref3 = _reference(p3, t3)
    assert jnp.allclose(loss3, ref3, rtol=1e-3, atol=1e-3), (loss3, ref3)

    print("KERNEL_OK")
</pallas_src>

<mosaic_0001>
module attributes {stable_mosaic.version = 11 : i64} {
  func.func @_cc_partial_kernel(%arg0: i32, %arg1: i32, %arg2: memref<8x128xf32, #tpu.memory_space<vmem>>, %arg3: memref<8x128xf32, #tpu.memory_space<vmem>>, %arg4: memref<1x1x1xf32, #tpu.memory_space<vmem>>) attributes {dimension_semantics = [#tpu.dimension_semantics<parallel>, #tpu.dimension_semantics<arbitrary>], iteration_bounds = array<i64: 2, 1>, scalar_prefetch = 0 : i64, scratch_operands = 0 : i64, tpu.core_type = #tpu.core_type<tc>, window_params = [{transform_indices = @transform_0, window_bounds = array<i64: 8, 128>}, {transform_indices = @transform_1, window_bounds = array<i64: 8, 128>}, {transform_indices = @transform_2, window_bounds = array<i64: 1, 1, 1>}]} {
    %c0_i32 = arith.constant 0 : i32
    %0 = arith.cmpi eq, %arg1, %c0_i32 : i32
    %1 = arith.extui %0 : i1 to i32
    %c0_i32_0 = arith.constant 0 : i32
    %2 = arith.cmpi ne, %1, %c0_i32_0 : i32
    scf.if %2 {
      %cst_11 = arith.constant 0.000000e+00 : f32
      %17 = vector.broadcast %cst_11 : f32 to vector<1x1x1xf32>
      %c0_12 = arith.constant 0 : index
      %c0_13 = arith.constant 0 : index
      %c0_14 = arith.constant 0 : index
      %18 = vector.load %arg4[%c0_12, %c0_13, %c0_14] : memref<1x1x1xf32, #tpu.memory_space<vmem>>, vector<1x1x1xf32>
      tpu.vector_store %arg4[%c0_12, %c0_13, %c0_14], %17 {strides = array<i32>} : memref<1x1x1xf32, #tpu.memory_space<vmem>>, vector<1x1x1xf32>,
    } else {
    }
    %c0 = arith.constant 0 : index
    %c0_1 = arith.constant 0 : index
    %3 = vector.load %arg2[%c0, %c0_1] : memref<8x128xf32, #tpu.memory_space<vmem>>, vector<8x128xf32>
    %c0_2 = arith.constant 0 : index
    %c0_3 = arith.constant 0 : index
    %4 = vector.load %arg3[%c0_2, %c0_3] : memref<8x128xf32, #tpu.memory_space<vmem>>, vector<8x128xf32>
    %5 = arith.subf %3, %4 : vector<8x128xf32>
    %6 = arith.mulf %5, %5 : vector<8x128xf32>
    %cst = arith.constant dense<0.000000e+00> : vector<8xf32>
    %7 = vector.multi_reduction <add>, %6, %cst [1] : vector<8x128xf32> to vector<8xf32>
    %8 = vector.shape_cast %7 : vector<8xf32> to vector<8x1xf32>
    %c0_4 = arith.constant 0 : index
    %c0_5 = arith.constant 0 : index
    %c0_6 = arith.constant 0 : index
    %9 = vector.load %arg4[%c0_4, %c0_5, %c0_6] : memref<1x1x1xf32, #tpu.memory_space<vmem>>, vector<1x1x1xf32>
    %10 = vector.shape_cast %8 : vector<8x1xf32> to vector<1x8x1xf32>
    %cst_7 = arith.constant dense<0.000000e+00> : vector<1xf32>
    %11 = vector.multi_reduction <add>, %10, %cst_7 [1, 2] : vector<1x8x1xf32> to vector<1xf32>
    %12 = vector.shape_cast %11 : vector<1xf32> to vector<1x1x1xf32>
    %13 = vector.extract %12[0, 0, 0] : f32 from vector<1x1x1xf32>
    %14 = vector.broadcast %13 : f32 to vector<1x1x1xf32>
    %15 = arith.addf %9, %14 : vector<1x1x1xf32>
    %c0_8 = arith.constant 0 : index
    %c0_9 = arith.constant 0 : index
    %c0_10 = arith.constant 0 : index
    %16 = vector.load %arg4[%c0_8, %c0_9, %c0_10] : memref<1x1x1xf32, #tpu.memory_space<vmem>>, vector<1x1x1xf32>
    tpu.vector_store %arg4[%c0_8, %c0_9, %c0_10], %15 {strides = array<i32>} : memref<1x1x1xf32, #tpu.memory_space<vmem>>, vector<1x1x1xf32>,
    return
  }
  func.func @transform_0(%arg0: i32, %arg1: i32) -> (i32, i32) {
    %c0_i32 = arith.constant 0 : i32
    return %arg0, %arg1 : i32, i32
  }
  func.func @transform_1(%arg0: i32, %arg1: i32) -> (i32, i32) {
    %c0_i32 = arith.constant 0 : i32
    return %arg0, %arg1 : i32, i32
  }
  func.func @transform_2(%arg0: i32, %arg1: i32) -> (i32, i32, i32) {
    %c0_i32 = arith.constant 0 : i32
    %c0_i32_0 = arith.constant 0 : i32
    %c0_i32_1 = arith.constant 0 : i32
    return %arg0, %c0_i32, %c0_i32_0 : i32, i32, i32
  }
}

</mosaic_0001>

<llo_original>
// kernel: cross_correlation_loss.1
$region0: #{cross_correlation_loss.1}
  #allocation0 [shape = 'u32[]', space=smem, size = 0x4, offset = 0x4, fixed_abs, tag = 'smem constant byte address 0x4 - core index']
  #allocation1 [shape = 'u32[72,128]{1,0:T(1,128)}', space=vmem, size = 0x9000, scoped, tag = 'internal scratch']
  %s0 = inlined_call_operand.hbm [shape: f32[16,128], index: 0, kind: input, shape index: {}]
  %s1 = inlined_call_operand.hbm [shape: f32[16,128], index: 1, kind: input, shape index: {}]
  %s2 = inlined_call_operand.vmem [shape: f32[2,1,1], index: 2, kind: output, shape index: {}]
  %s3 = sld [smem:[#allocation0]]
  $region53: #{cross_correlation_loss.1} parent=0
    _
  %s5 = ssub.s32 1, %s3
  %s6 = scalar_select 0, %s5, %s3
  $region1: #{cross_correlation_loss.1} parent=0
    #allocation2 [shape = 'u8[8192]{0}', space=vmem, size = 0x2000, scoped, tag = 'input window, operand 0']
    #allocation3 [shape = 's32[2]{0}', space=sflag, size = 0x8, scoped, tag = 'scoped memory for cross_correlation_loss.1']
    #allocation4 [shape = 'u8[8192]{0}', space=vmem, size = 0x2000, scoped, tag = 'input window, operand 1']
    #allocation5 [shape = 's32[2]{0}', space=sflag, size = 0x8, scoped, tag = 'scoped memory for cross_correlation_loss.1']
    %7 = vsyncpa [#allocation3], 0
    %s8 = scalar_lea.sflag [#allocation3], 1
    %9 = vsyncpa %s8, 0
    %10 = vsyncpa [#allocation5], 0
    %s11 = scalar_lea.sflag [#allocation5], 1
    %12 = vsyncpa %s11, 0
    loop: start=0, step=1, limit=4
    $region2: #{cross_correlation_loss.1} parent=1 // loop_pre_header
      _
    $region3: #{cross_correlation_loss.1} parent=1 // loop_header
      %s14 = sphi 0, %s18
      %p15 = scmp.ge.s32.totalorder %s14, 4
      %s21 = sphi 0, %s33
      %s22 = sphi 0, %s29
      %s23 = sphi 0, %s21
      %s24 = sphi 0, %s22
      %s25 = sphi 0, %s23
      %s26 = sphi 0, %s24
      %s38 = sphi 0, %s40
      %s41 = sphi 0, %s38
      %s42 = sphi 0, %s41
      %s58 = sphi 0, %s42
      %s66 = sphi 0, %s68
      %s69 = sphi 0, %s66
      %s70 = sphi 0, %s69
      %s86 = sphi 0, %s70
      %s92 = sphi 0, %s94
      %s95 = sphi 0, %s92
      %s96 = sphi 0, %s95
      %s112 = sphi 0, %s96
    $region4: #{cross_correlation_loss.1} parent=1 // loop_header_branch
      %17 = sbr.rel (%p15) target = $region8
    $region5: #{cross_correlation_loss.1} parent=1 // loop_body
      %s19 = ssub.s32 %s14, 1
      %s20 = ssub.s32 %s14, 2
      %s27 = sadd.s32 1, %s22
      %p28 = scmp.ge.s32.totalorder %s27, 1
      %s29 = scalar_select %p28, 0, %s27
      %s30 = sadd.s32 1, %s21
      %s31 = scalar_select %p28, %s30, %s21
      %p32 = scmp.ge.s32.totalorder %s31, 2
      %s33 = scalar_select %p32, 0, %s31
      %s34 = ssub.s32 %s21, %s33
      %s35 = ssub.s32 %s22, %s29
      %s36 = sor.u32 %s34, %s35
      %p37 = scmp.eq.s32.totalorder %s36, 0
      %s39 = sadd.s32 %s38, 1
      %s40 = scalar_select %p37, %s38, %s39
      %p43 = pneg %p37
      %p44 = scmp.eq.s32.totalorder %s14, 1
      %p45 = por %p43, %p44
      %p46 = scmp.ne.s32.totalorder %s38, %s41
      %p47 = scmp.eq.s32.totalorder %s14, 0
      %p48 = por %p46, %p47
      %p49 = scmp.ne.s32.totalorder %s38, %s41
      %p50 = scmp.eq.s32.totalorder %s19, 1
      %p51 = por %p49, %p50
      %p52 = scmp.ne.s32.totalorder %s41, %s42
      %p53 = scmp.eq.s32.totalorder %s19, 0
      %p54 = por %p52, %p53
      %p55 = scmp.ne.s32.totalorder %s41, %s42
      %p56 = scmp.eq.s32.totalorder %s20, 1
      %p57 = por %p55, %p56
      %p59 = scmp.ne.s32.totalorder %s42, %s58
      %p60 = scmp.eq.s32.totalorder %s20, 0
      %p61 = por %p59, %p60
      %s62 = ssub.s32 %s21, %s33
      %s63 = ssub.s32 %s22, %s29
      %s64 = sor.u32 %s62, %s63
      %p65 = scmp.eq.s32.totalorder %s64, 0
      %s67 = sadd.s32 %s66, 1
      %s68 = scalar_select %p65, %s66, %s67
      %p71 = pneg %p65
      %p72 = scmp.eq.s32.totalorder %s14, 1
      %p73 = por %p71, %p72
      %p74 = scmp.ne.s32.totalorder %s66, %s69
      %p75 = scmp.eq.s32.totalorder %s14, 0
      %p76 = por %p74, %p75
      %p77 = scmp.ne.s32.totalorder %s66, %s69
      %p78 = scmp.eq.s32.totalorder %s19, 1
      %p79 = por %p77, %p78
      %p80 = scmp.ne.s32.totalorder %s69, %s70
      %p81 = scmp.eq.s32.totalorder %s19, 0
      %p82 = por %p80, %p81
      %p83 = scmp.ne.s32.totalorder %s69, %s70
      %p84 = scmp.eq.s32.totalorder %s20, 1
      %p85 = por %p83, %p84
      %p87 = scmp.ne.s32.totalorder %s70, %s86
      %p88 = scmp.eq.s32.totalorder %s20, 0
      %p89 = por %p87, %p88
      %s90 = ssub.s32 %s21, %s33
      %p91 = scmp.eq.s32.totalorder %s90, 0
      %s93 = sadd.s32 %s92, 1
      %s94 = scalar_select %p91, %s92, %s93
      %p97 = pneg %p91
      %p98 = scmp.eq.s32.totalorder %s14, 1
      %p99 = por %p97, %p98
      %p100 = scmp.ne.s32.totalorder %s92, %s95
      %p101 = scmp.eq.s32.totalorder %s14, 0
      %p102 = por %p100, %p101
      %p103 = scmp.ne.s32.totalorder %s92, %s95
      %p104 = scmp.eq.s32.totalorder %s19, 1
      %p105 = por %p103, %p104
      %p106 = scmp.ne.s32.totalorder %s95, %s96
      %p107 = scmp.eq.s32.totalorder %s19, 0
      %p108 = por %p106, %p107
      %p109 = scmp.ne.s32.totalorder %s95, %s96
      %p110 = scmp.eq.s32.totalorder %s20, 1
      %p111 = por %p109, %p110
      %p113 = scmp.ne.s32.totalorder %s96, %s112
      %p114 = scmp.eq.s32.totalorder %s20, 0
      %p115 = por %p113, %p114
      %p116 = scmp.le.s32.totalorder 1, %s14
      %p117 = scmp.lt.s32.totalorder %s14, 3
      %p118 = pnand %p116, %p117
      %p119 = pneg %p118
      // Predicated region
      $region9: #{cross_correlation_loss.1} parent=5 // pred_check
        _
      $region10: #{cross_correlation_loss.1} parent=5 // pred_check_branch
        %121 = sbr.rel (%p118) target = $region12
      $region11: #{cross_correlation_loss.1} parent=5 // pred_region
        %s122 = ssub.s32 %s14, 1
      $region12: #{cross_correlation_loss.1} parent=5 // pred_fallthru
        _
      %p123 = scmp.lt.s32.totalorder %s14, 2
      // Predicated region
      $region13: #{cross_correlation_loss.1} parent=5 // pred_check
        %p124 = pneg %p123
      $region14: #{cross_correlation_loss.1} parent=5 // pred_check_branch
        %126 = sbr.rel (%p124) target = $region16
      $region15: #{cross_correlation_loss.1} parent=5 // pred_region
        // Predicated region
        $region17: #{cross_correlation_loss.1} parent=15 // pred_check
          %p127 = pneg %p48
        $region18: #{cross_correlation_loss.1} parent=15 // pred_check_branch
          %129 = sbr.rel (%p127) target = $region20
        $region19: #{cross_correlation_loss.1} parent=15 // pred_region
          %s130 = sand.u32 %s38, 1
          %s131 = scalar_lea.sflag [#allocation3], %s130
          %s132 = sand.u32 %s38, 1
          %s133 = smul.addr %s132, 8
          %s134 = scalar_lea.vmem [#allocation2], %s133
          %136 = vsyncadd %s131, 0
          %s137 = sadd.s32 %s22, %s21
          %s138 = smul.addr %s137, 8
          %s139 = scalar_lea.hbm %s0, %s138
          %s141 = sshll.u32 %s139, 4
          %s142 = int_to_ptr.hbm [resolvable:$true] %s141
          %s143 = sshll.u32 %s134, 4
          %s144 = int_to_ptr.vmem [resolvable:$true] %s143
          %146 = dma.hbm_to_vmem [thread:$0]  %s142, 128, %s144, %s131
        $region20: #{cross_correlation_loss.1} parent=15 // pred_fallthru
          _
        // Predicated region
        $region21: #{cross_correlation_loss.1} parent=15 // pred_check
          %p147 = pneg %p76
        $region22: #{cross_correlation_loss.1} parent=15 // pred_check_branch
          %149 = sbr.rel (%p147) target = $region24
        $region23: #{cross_correlation_loss.1} parent=15 // pred_region
          %s150 = sand.u32 %s66, 1
          %s151 = scalar_lea.sflag [#allocation5], %s150
          %s152 = sand.u32 %s66, 1
          %s153 = smul.addr %s152, 8
          %s154 = scalar_lea.vmem [#allocation4], %s153
          %156 = vsyncadd %s151, 0
          %s157 = sadd.s32 %s22, %s21
          %s158 = smul.addr %s157, 8
          %s159 = scalar_lea.hbm %s1, %s158
          %s161 = sshll.u32 %s159, 4
          %s162 = int_to_ptr.hbm [resolvable:$true] %s161
          %s163 = sshll.u32 %s154, 4
          %s164 = int_to_ptr.vmem [resolvable:$true] %s163
          %166 = dma.hbm_to_vmem [thread:$0]  %s162, 128, %s164, %s151
        $region24: #{cross_correlation_loss.1} parent=15 // pred_fallthru
          _
      $region16: #{cross_correlation_loss.1} parent=5 // pred_fallthru
        _
      %p167 = scmp.le.s32.totalorder 1, %s14
      %p168 = scmp.lt.s32.totalorder %s14, 3
      %p169 = pnand %p167, %p168
      %p170 = pneg %p169
      // Predicated region
      $region25: #{cross_correlation_loss.1} parent=5 // pred_check
        _
      $region26: #{cross_correlation_loss.1} parent=5 // pred_check_branch
        %172 = sbr.rel (%p169) target = $region28
      $region27: #{cross_correlation_loss.1} parent=5 // pred_region
        %s173 = ssub.s32 %s14, 1
        %s174 = sand.u32 %s41, 1
        %s175 = scalar_lea.sflag [#allocation3], %s174
        %s176 = sand.u32 %s41, 1
        %s177 = smul.addr %s176, 8
        %s178 = scalar_lea.vmem [#allocation2], %s177
        // Predicated region
        $region29: #{cross_correlation_loss.1} parent=27 // pred_check
          %p179 = pneg %p54
        $region30: #{cross_correlation_loss.1} parent=27 // pred_check_branch
          %181 = sbr.rel (%p179) target = $region32
        $region31: #{cross_correlation_loss.1} parent=27 // pred_region
          %183 = dma.done %s175, 128
        $region32: #{cross_correlation_loss.1} parent=27 // pred_fallthru
          _
        %s184 = sand.u32 %s69, 1
        %s185 = scalar_lea.sflag [#allocation5], %s184
        %s186 = sand.u32 %s69, 1
        %s187 = smul.addr %s186, 8
        %s188 = scalar_lea.vmem [#allocation4], %s187
        // Predicated region
        $region33: #{cross_correlation_loss.1} parent=27 // pred_check
          %p189 = pneg %p82
        $region34: #{cross_correlation_loss.1} parent=27 // pred_check_branch
          %191 = sbr.rel (%p189) target = $region36
        $region35: #{cross_correlation_loss.1} parent=27 // pred_region
          %193 = dma.done %s185, 128
        $region36: #{cross_correlation_loss.1} parent=27 // pred_fallthru
          _
        %s194 = sand.u32 %s41, 1
        %s195 = scalar_lea.sflag [#allocation3], %s194
        %s196 = sand.u32 %s41, 1
        %s197 = smul.addr %s196, 8
        %s198 = scalar_lea.vmem [#allocation2], %s197
        %p199 = pneg %p54
        %p200 = pneg %p51
        %s201 = sand.u32 %s69, 1
        %s202 = scalar_lea.sflag [#allocation5], %s201
        %s203 = sand.u32 %s69, 1
        %s204 = smul.addr %s203, 8
        %s205 = scalar_lea.vmem [#allocation4], %s204
        %p206 = pneg %p82
        %p207 = pneg %p79
        %p208 = pneg %p108
        %p209 = pneg %p105
        %p210 = scmp.lt.s32.totalorder %s23, 1
        %s211 = scalar_select %p210, %s23, 1
        %s212 = scalar_lea.vmem %s2, %s211
        %p213 = scmp.lt.s32.totalorder %s23, 1
        %s214 = scalar_select %p213, %s23, 1
        %s215 = scalar_lea.vmem %s2, %s214
        %p216 = scmp.eq.s32.totalorder %s24, 0
        // Predicated region
        $region37: #{cross_correlation_loss.1} parent=27 // pred_check
          %p217 = pneg %p216
        $region38: #{cross_correlation_loss.1} parent=27 // pred_check_branch
          %219 = sbr.rel (%p217) target = $region40
        $region39: #{cross_correlation_loss.1} parent=27 // pred_region
          %vm220 = vcmask 0
          %221 = vst.msk [vmem:[%s215] sm:$0x1] %vm220, 0.0
        $region40: #{cross_correlation_loss.1} parent=27 // pred_fallthru
          _
        %v222 = vld [vmem:[%s178] sm:$0xff]
        %v223 = vld [vmem:[%s188] sm:$0xff]
        %v224 = vsub.f32 %v222, %v223
        %v225 = vmul.f32 %v224, %v224
        %226 = vadd.xlane.f32.xlu0 %v225
        %v227 = vpop.xlane.xlu0 %226
        %v228 = vld [vmem:[%s215] sm:$0x1]
        %vm229 = vcmask 7168
        %v230 = vsel %vm229, %v227, 0.0
        %231 = vadd.xlane.f32.xlu0 %v230
        %v232 = vpop.xlane.xlu0 %231
        %v233 = vrot.slane %v232, 4
        %v234 = vadd.f32 %v232, %v233
        %v235 = vrot.slane %v234, 2
        %v236 = vadd.f32 %v234, %v235
        %v237 = vrot.slane %v236, 1
        %v238 = vadd.f32 %v236, %v237
        %s239 = vtos %v238
        %v240 = vstv %s239
        %v241 = vadd.f32 %v228, %v240
        %vm242 = vcmask 0
        %243 = vst.msk [vmem:[%s215] sm:$0x1] %vm242, %v241
        %p244 = scmp.lt.s32.totalorder %s23, 1
        %s245 = scalar_select %p244, %s23, 1
        %s246 = scalar_lea.vmem %s2, %s245
        // Predicated region
        $region41: #{cross_correlation_loss.1} parent=27 // pred_check
          %p247 = pneg %p105
        $region42: #{cross_correlation_loss.1} parent=27 // pred_check_branch
          %249 = sbr.rel (%p247) target = $region44
        $region43: #{cross_correlation_loss.1} parent=27 // pred_region
          _
        $region44: #{cross_correlation_loss.1} parent=27 // pred_fallthru
          _
      $region28: #{cross_correlation_loss.1} parent=5 // pred_fallthru
        _
      %p250 = scmp.le.s32.totalorder 2, %s14
      // Predicated region
      $region45: #{cross_correlation_loss.1} parent=5 // pred_check
        %p251 = pneg %p250
      $region46: #{cross_correlation_loss.1} parent=5 // pred_check_branch
        %253 = sbr.rel (%p251) target = $region48
      $region47: #{cross_correlation_loss.1} parent=5 // pred_region
        %s254 = ssub.s32 %s14, 2
        // Predicated region
        $region49: #{cross_correlation_loss.1} parent=47 // pred_check
          %p255 = pneg %p111
        $region50: #{cross_correlation_loss.1} parent=47 // pred_check_branch
          %257 = sbr.rel (%p255) target = $region52
        $region51: #{cross_correlation_loss.1} parent=47 // pred_region
          %p258 = scmp.lt.s32.totalorder %s25, 1
          %s259 = scalar_select %p258, %s25, 1
          %s260 = scalar_lea.vmem %s2, %s259
        $region52: #{cross_correlation_loss.1} parent=47 // pred_fallthru
          _
      $region48: #{cross_correlation_loss.1} parent=5 // pred_fallthru
        _
    $region6: #{cross_correlation_loss.1} parent=1 // loop_footer
      %s18 = sadd.s32 1, %s14
    $region7: #{cross_correlation_loss.1} parent=1 // loop_footer_branch
      %13 = sbr.rel target = $region3
    $region8: #{cross_correlation_loss.1} parent=1 // loop_exit
      _
    %261 = vsyncpa [#allocation3], 1
    %s262 = scalar_lea.sflag [#allocation3], 1
    %263 = vsyncpa %s262, 1
    %264 = vsyncpa [#allocation5], 1
    %s265 = scalar_lea.sflag [#allocation5], 1
    %266 = vsyncpa %s265, 1

</llo_original>
